<compile_context>
chip_gen: v6e
topology: v6e:2x2x1
jax: 0.10.0
libtpu: 0.0.40
codegen_flags: <defaults>
</compile_context>

<pallas_src>
import functools

import jax
import jax.numpy as jnp
from jax.experimental import pallas as pl
from jax.experimental.pallas import tpu as pltpu


_X_TILE_BUDGET = 8 * 1024 * 1024  # bytes per (single) x input buffer


def _round_up(x, m):
    return ((x + m - 1) // m) * m


def _pick_tile(dim, max_tile, align):
    """Largest t <= max_tile with dim % t == 0 and t % align == 0 (else full dim)."""
    if dim <= max_tile:
        return dim
    t = (max_tile // align) * align
    while t >= align:
        if dim % t == 0:
            return t
        t -= align
    return dim  # fallback: single block over this dim


def _vmem_limit_bytes(footprint):
    # Generous headroom, clamped to something safe on every generation (v7x has 64 MiB).
    return int(min(max(2 * footprint, 32 * 1024 * 1024), 64 * 1024 * 1024))


def _pool_fc_kernel(x_ref, w_ref, b_ref, o_ref, *, inv_hw):
    # x_ref: [tb, HW, C]  w_ref: [OUT_pad, C]  b_ref: [1, OUT_pad]  o_ref: [tb, OUT_pad]
    # Pool over the sublane (HW) axis, accumulating in f32 without up-casting the
    # whole tile; the pooled [tb, C] result keeps C on lanes (matmul contraction dim).
    pooled = jnp.sum(x_ref[...], axis=1, dtype=jnp.float32) * inv_hw
    pooled = pooled.astype(w_ref.dtype)  # tiny; lets bf16 weights hit the MXU natively
    out = jax.lax.dot_general(
        pooled, w_ref[...],
        dimension_numbers=(((1,), (1,)), ((), ())),  # contract C with weight's last dim
        preferred_element_type=jnp.float32)
    o_ref[...] = (out + b_ref[...].astype(jnp.float32)).astype(o_ref.dtype)


def _fc_kernel(x_ref, w_ref, b_ref, o_ref, acc_ref):
    # with_avg_pool=False path.
    # x_ref: [tb, tk]  w_ref: [OUT_pad, tk]  b_ref: [1, OUT_pad]
    # o_ref: [tb, OUT_pad]  acc_ref: [tb, OUT_pad] f32 scratch
    k = pl.program_id(1)

    @pl.when(k == 0)
    def _init():
        acc_ref[...] = jnp.zeros_like(acc_ref)

    x = x_ref[...]
    w = w_ref[...]
    if x.dtype != w.dtype:  # static decision at trace time; no cost when dtypes match
        x = x.astype(w.dtype)
    acc_ref[...] += jax.lax.dot_general(
        x, w,
        dimension_numbers=(((1,), (1,)), ((), ())),
        preferred_element_type=jnp.float32)

    @pl.when(k == pl.num_programs(1) - 1)
    def _finalize():
        o_ref[...] = (acc_ref[...] + b_ref[...].astype(jnp.float32)).astype(o_ref.dtype)


def linear_neck_forward(xs, weight, bias, with_avg_pool=True, *,
                        batch_tile=None, k_tile=None):
    """Mirrors LinearNeck.forward.

    xs:     list/tuple of exactly one array, NCHW [B, C, H, W]
    weight: [OUT, IN]  (PyTorch nn.Linear layout; IN = C if with_avg_pool else C*H*W)
    bias:   [OUT]
    returns list of one array [B, OUT]
    """
    assert len(xs) == 1
    x = xs[0]
    B, C, H, W = x.shape
    out_channels, in_features = weight.shape
    x_item = jnp.dtype(x.dtype).itemsize
    w_item = jnp.dtype(weight.dtype).itemsize

    # Pad OUT to a lane-dense multiple of 128 (unmasked vst); slice off afterwards.
    out_pad = _round_up(out_channels, 128)
    if out_pad != out_channels:
        weight = jnp.pad(weight, ((0, out_pad - out_channels), (0, 0)))
        bias = jnp.pad(bias, (0, out_pad - out_channels))
    bias2 = bias.reshape(1, out_pad)

    if with_avg_pool:
        assert in_features == C
        HW = H * W
        # Layout plumbing in the wrapper: [B, C, H, W] -> [B, HW, C].
        x_k = jnp.transpose(x.reshape(B, C, HW), (0, 2, 1))
        row_bytes = HW * C * x_item
        tb = batch_tile or _pick_tile(B, max(8, _X_TILE_BUDGET // max(1, row_bytes)), 8)
        assert B % tb == 0, "batch_tile must divide B"
        grid = (B // tb,)
        kernel = functools.partial(_pool_fc_kernel, inv_hw=1.0 / HW)
        in_specs = [
            pl.BlockSpec((tb, HW, C), lambda b: (b, 0, 0)),
            pl.BlockSpec((out_pad, C), lambda b: (0, 0)),   # constant index -> resident weight
            pl.BlockSpec((1, out_pad), lambda b: (0, 0)),
        ]
        out_spec = pl.BlockSpec((tb, out_pad), lambda b: (b, 0))
        scratch_shapes = []
        dim_sem = ("parallel",)
        footprint = (2 * tb * row_bytes + 2 * out_pad * C * w_item
                     + 2 * tb * out_pad * x_item + 2 * out_pad * 4)
    else:
        K = C * H * W
        assert in_features == K
        x_k = x.reshape(B, K)
        tk = k_tile or _pick_tile(K, 2048, 128)
        assert K % tk == 0, "k_tile must divide C*H*W"
        tb = batch_tile or _pick_tile(B, max(8, _X_TILE_BUDGET // max(1, tk * x_item)), 8)
        assert B % tb == 0, "batch_tile must divide B"
        grid = (B // tb, K // tk)
        kernel = _fc_kernel
        in_specs = [
            pl.BlockSpec((tb, tk), lambda b, k: (b, k)),
            pl.BlockSpec((out_pad, tk), lambda b, k: (0, k)),
            pl.BlockSpec((1, out_pad), lambda b, k: (0, 0)),
        ]
        out_spec = pl.BlockSpec((tb, out_pad), lambda b, k: (b, 0))
        scratch_shapes = [pltpu.VMEM((tb, out_pad), jnp.float32)]
        dim_sem = ("parallel", "arbitrary")  # reduction axis last
        footprint = (2 * tb * tk * x_item + 2 * out_pad * tk * w_item
                     + 2 * tb * out_pad * x_item + tb * out_pad * 4 + 2 * out_pad * 4)

    out_padded = pl.pallas_call(
        kernel,
        out_shape=jax.ShapeDtypeStruct((B, out_pad), x.dtype),
        grid_spec=pltpu.PrefetchScalarGridSpec(
            num_scalar_prefetch=0,
            grid=grid,
            in_specs=in_specs,
            out_specs=out_spec,
            scratch_shapes=scratch_shapes),
        compiler_params=pltpu.CompilerParams(
            dimension_semantics=dim_sem,
            vmem_limit_bytes=_vmem_limit_bytes(footprint)),
    )(x_k, weight, bias2)

    return [out_padded[:, :out_channels]]


if __name__ == "__main__":
    # Small shapes consistent with the module.
    B, C, H, W = 2, 4, 16, 16
    OUT = 32

    key = jax.random.PRNGKey(0)
    kx, kw1, kb1, kw2, kb2 = jax.random.split(key, 5)

    x = jax.random.normal(kx, (B, C, H, W), dtype=jnp.float32)

    # --- with_avg_pool=True: fc = nn.Linear(C, OUT) ---
    w1 = jax.random.normal(kw1, (OUT, C), dtype=jnp.float32) * 0.02
    b1 = jax.random.normal(kb1, (OUT,), dtype=jnp.float32) * 0.01
    out1 = jax.block_until_ready(linear_neck_forward([x], w1, b1, with_avg_pool=True)[0])
    ref1 = jnp.mean(x, axis=(2, 3)) @ w1.T + b1
    assert out1.shape == (B, OUT)
    assert jnp.allclose(out1, ref1, atol=1e-4, rtol=1e-4), \
        float(jnp.max(jnp.abs(out1 - ref1)))

    # --- with_avg_pool=False: fc = nn.Linear(C*H*W, OUT) ---
    # k_tile=256 forces a multi-step K accumulation through the f32 scratch.
    K = C * H * W
    w2 = jax.random.normal(kw2, (OUT, K), dtype=jnp.float32) * 0.02
    b2 = jax.random.normal(kb2, (OUT,), dtype=jnp.float32) * 0.01
    out2 = jax.block_until_ready(
        linear_neck_forward([x], w2, b2, with_avg_pool=False, k_tile=256)[0])
    ref2 = x.reshape(B, -1) @ w2.T + b2
    assert out2.shape == (B, OUT)
    assert jnp.allclose(out2, ref2, atol=1e-4, rtol=1e-4), \
        float(jnp.max(jnp.abs(out2 - ref2)))

    print("KERNEL_OK")
</pallas_src>

<mosaic_0001>
module attributes {stable_mosaic.version = 11 : i64} {
  func.func @_pool_fc_kernel(%arg0: i32, %arg1: memref<2x256x4xf32, #tpu.memory_space<vmem>>, %arg2: memref<128x4xf32, #tpu.memory_space<vmem>>, %arg3: memref<1x128xf32, #tpu.memory_space<vmem>>, %arg4: memref<2x128xf32, #tpu.memory_space<vmem>>) attributes {dimension_semantics = [#tpu.dimension_semantics<parallel>], iteration_bounds = array<i64: 1>, scalar_prefetch = 0 : i64, scratch_operands = 0 : i64, tpu.core_type = #tpu.core_type<tc>, window_params = [{transform_indices = @transform_0, window_bounds = array<i64: 2, 256, 4>}, {pipeline_mode = #tpu.pipeline_mode<synchronous>, transform_indices = @transform_1, window_bounds = array<i64: 128, 4>}, {pipeline_mode = #tpu.pipeline_mode<synchronous>, transform_indices = @transform_2, window_bounds = array<i64: 1, 128>}, {transform_indices = @transform_3, window_bounds = array<i64: 2, 128>}]} {
    %c0 = arith.constant 0 : index
    %c0_0 = arith.constant 0 : index
    %c0_1 = arith.constant 0 : index
    %0 = vector.load %arg1[%c0, %c0_0, %c0_1] : memref<2x256x4xf32, #tpu.memory_space<vmem>>, vector<2x256x4xf32>
    %cst = arith.constant dense<0.000000e+00> : vector<2x4xf32>
    %1 = vector.multi_reduction <add>, %0, %cst [1] : vector<2x256x4xf32> to vector<2x4xf32>
    %cst_2 = arith.constant 3.906250e-03 : f32
    %2 = vector.broadcast %cst_2 : f32 to vector<2x4xf32>
    %3 = arith.mulf %1, %2 : vector<2x4xf32>
    %c0_3 = arith.constant 0 : index
    %c0_4 = arith.constant 0 : index
    %4 = vector.load %arg2[%c0_3, %c0_4] : memref<128x4xf32, #tpu.memory_space<vmem>>, vector<128x4xf32>
    %cst_5 = arith.constant dense<0.000000e+00> : vector<2x128xf32>
    %5 = tpu.matmul %3, %4, %cst_5 {dimension_numbers = #tpu.dot_dimension_numbers<[1], [1], [0], [0], [0, 0, 1, 0], [], []>} : vector<2x4xf32>, vector<128x4xf32>, vector<2x128xf32> -> vector<2x128xf32>
    %c0_6 = arith.constant 0 : index
    %c0_7 = arith.constant 0 : index
    %6 = vector.load %arg3[%c0_6, %c0_7] : memref<1x128xf32, #tpu.memory_space<vmem>>, vector<1x128xf32>
    %7 = vector.broadcast %6 : vector<1x128xf32> to vector<2x128xf32>
    %8 = arith.addf %5, %7 : vector<2x128xf32>
    %c0_8 = arith.constant 0 : index
    %c0_9 = arith.constant 0 : index
    %9 = vector.load %arg4[%c0_8, %c0_9] : memref<2x128xf32, #tpu.memory_space<vmem>>, vector<2x128xf32>
    tpu.vector_store %arg4[%c0_8, %c0_9], %8 {strides = array<i32>} : memref<2x128xf32, #tpu.memory_space<vmem>>, vector<2x128xf32>,
    return
  }
  func.func @transform_0(%arg0: i32) -> (i32, i32, i32) {
    %c0_i32 = arith.constant 0 : i32
    %c0_i32_0 = arith.constant 0 : i32
    %c0_i32_1 = arith.constant 0 : i32
    return %arg0, %c0_i32, %c0_i32_0 : i32, i32, i32
  }
  func.func @transform_1(%arg0: i32) -> (i32, i32) {
    %c0_i32 = arith.constant 0 : i32
    %c0_i32_0 = arith.constant 0 : i32
    %c0_i32_1 = arith.constant 0 : i32
    return %c0_i32, %c0_i32_0 : i32, i32
  }
  func.func @transform_2(%arg0: i32) -> (i32, i32) {
    %c0_i32 = arith.constant 0 : i32
    %c0_i32_0 = arith.constant 0 : i32
    %c0_i32_1 = arith.constant 0 : i32
    return %c0_i32, %c0_i32_0 : i32, i32
  }
  func.func @transform_3(%arg0: i32) -> (i32, i32) {
    %c0_i32 = arith.constant 0 : i32
    %c0_i32_0 = arith.constant 0 : i32
    return %arg0, %c0_i32 : i32, i32
  }
}

</mosaic_0001>

<llo_original>
// kernel: tpu_custom_call.1
$region0: #{tpu_custom_call.1}
  #allocation0 [shape = 'u32[]', space=smem, size = 0x4, offset = 0x4, fixed_abs, tag = 'smem constant byte address 0x4 - core index']
  #allocation1 [shape = 'u32[144,128]{1,0:T(1,128)}', space=vmem, size = 0x12000, scoped, tag = 'internal scratch']
  %s0 = inlined_call_operand.vmem [shape: f32[2,256,4], index: 0, kind: input, shape index: {}]
  %s1 = inlined_call_operand.vmem [shape: f32[128,4], index: 1, kind: input, shape index: {}]
  %s2 = inlined_call_operand.vmem [shape: f32[1,128], index: 2, kind: input, shape index: {}]
  %s3 = inlined_call_operand.hbm [shape: f32[2,128], index: 3, kind: output, shape index: {}]
  %s4 = sld [smem:[#allocation0]]
  $region22: #{tpu_custom_call.1} parent=0
    _
  %s6 = ssub.s32 1, %s4
  %s7 = scalar_select 0, %s6, %s4
  $region1: #{tpu_custom_call.1} parent=0
    #allocation2 [shape = 'u8[1024]{0}', space=vmem, size = 0x400, scoped, tag = 'output window, operand 0, single buffered']
    #allocation3 [shape = 's32[1]{0}', space=sflag, size = 0x4, scoped, tag = 'scoped memory for tpu_custom_call.1']
    %8 = vsyncpa [#allocation3], 0
    // Predicated region
    $region2: #{tpu_custom_call.1} parent=1 // pred_check
      _
    $region3: #{tpu_custom_call.1} parent=1 // pred_check_branch
      %10 = sbr.rel (0) target = $region5
    $region4: #{tpu_custom_call.1} parent=1 // pred_region
      _
    $region5: #{tpu_custom_call.1} parent=1 // pred_fallthru
      _
    // Predicated region
    $region6: #{tpu_custom_call.1} parent=1 // pred_check
      _
    $region7: #{tpu_custom_call.1} parent=1 // pred_check_branch
      %12 = sbr.rel (0) target = $region9
    $region8: #{tpu_custom_call.1} parent=1 // pred_region
      _
    $region9: #{tpu_custom_call.1} parent=1 // pred_fallthru
      _
    // Predicated region
    $region10: #{tpu_custom_call.1} parent=1 // pred_check
      _
    $region11: #{tpu_custom_call.1} parent=1 // pred_check_branch
      %14 = sbr.rel (0) target = $region13
    $region12: #{tpu_custom_call.1} parent=1 // pred_region
      _
    $region13: #{tpu_custom_call.1} parent=1 // pred_fallthru
      _
    %v15 = vld [vmem:[%s0] sm:$0xff]
    %v16 = vld [vmem:[%s0 + $0x8] sm:$0xff]
    %v17 = vld [vmem:[%s0 + $0x10] sm:$0xff]
    %v18 = vld [vmem:[%s0 + $0x18] sm:$0xff]
    %v19 = vld [vmem:[%s0 + $0x20] sm:$0xff]
    %v20 = vld [vmem:[%s0 + $0x28] sm:$0xff]
    %v21 = vld [vmem:[%s0 + $0x30] sm:$0xff]
    %v22 = vld [vmem:[%s0 + $0x38] sm:$0xff]
    %v23 = vld [vmem:[%s0 + $0x40] sm:$0xff]
    %v24 = vld [vmem:[%s0 + $0x48] sm:$0xff]
    %v25 = vld [vmem:[%s0 + $0x50] sm:$0xff]
    %v26 = vld [vmem:[%s0 + $0x58] sm:$0xff]
    %v27 = vld [vmem:[%s0 + $0x60] sm:$0xff]
    %v28 = vld [vmem:[%s0 + $0x68] sm:$0xff]
    %v29 = vld [vmem:[%s0 + $0x70] sm:$0xff]
    %v30 = vld [vmem:[%s0 + $0x78] sm:$0xff]
    %v31 = vld [vmem:[%s0 + $0x80] sm:$0xff]
    %v32 = vld [vmem:[%s0 + $0x88] sm:$0xff]
    %v33 = vld [vmem:[%s0 + $0x90] sm:$0xff]
    %v34 = vld [vmem:[%s0 + $0x98] sm:$0xff]
    %v35 = vld [vmem:[%s0 + $0xa0] sm:$0xff]
    %v36 = vld [vmem:[%s0 + $0xa8] sm:$0xff]
    %v37 = vld [vmem:[%s0 + $0xb0] sm:$0xff]
    %v38 = vld [vmem:[%s0 + $0xb8] sm:$0xff]
    %v39 = vld [vmem:[%s0 + $0xc0] sm:$0xff]
    %v40 = vld [vmem:[%s0 + $0xc8] sm:$0xff]
    %v41 = vld [vmem:[%s0 + $0xd0] sm:$0xff]
    %v42 = vld [vmem:[%s0 + $0xd8] sm:$0xff]
    %v43 = vld [vmem:[%s0 + $0xe0] sm:$0xff]
    %v44 = vld [vmem:[%s0 + $0xe8] sm:$0xff]
    %v45 = vld [vmem:[%s0 + $0xf0] sm:$0xff]
    %v46 = vld [vmem:[%s0 + $0xf8] sm:$0xff]
    %v47 = vld [vmem:[%s0 + $0x100] sm:$0xff]
    %v48 = vld [vmem:[%s0 + $0x108] sm:$0xff]
    %v49 = vld [vmem:[%s0 + $0x110] sm:$0xff]
    %v50 = vld [vmem:[%s0 + $0x118] sm:$0xff]
    %v51 = vld [vmem:[%s0 + $0x120] sm:$0xff]
    %v52 = vld [vmem:[%s0 + $0x128] sm:$0xff]
    %v53 = vld [vmem:[%s0 + $0x130] sm:$0xff]
    %v54 = vld [vmem:[%s0 + $0x138] sm:$0xff]
    %v55 = vld [vmem:[%s0 + $0x140] sm:$0xff]
    %v56 = vld [vmem:[%s0 + $0x148] sm:$0xff]
    %v57 = vld [vmem:[%s0 + $0x150] sm:$0xff]
    %v58 = vld [vmem:[%s0 + $0x158] sm:$0xff]
    %v59 = vld [vmem:[%s0 + $0x160] sm:$0xff]
    %v60 = vld [vmem:[%s0 + $0x168] sm:$0xff]
    %v61 = vld [vmem:[%s0 + $0x170] sm:$0xff]
    %v62 = vld [vmem:[%s0 + $0x178] sm:$0xff]
    %v63 = vld [vmem:[%s0 + $0x180] sm:$0xff]
    %v64 = vld [vmem:[%s0 + $0x188] sm:$0xff]
    %v65 = vld [vmem:[%s0 + $0x190] sm:$0xff]
    %v66 = vld [vmem:[%s0 + $0x198] sm:$0xff]
    %v67 = vld [vmem:[%s0 + $0x1a0] sm:$0xff]
    %v68 = vld [vmem:[%s0 + $0x1a8] sm:$0xff]
    %v69 = vld [vmem:[%s0 + $0x1b0] sm:$0xff]
    %v70 = vld [vmem:[%s0 + $0x1b8] sm:$0xff]
    %v71 = vld [vmem:[%s0 + $0x1c0] sm:$0xff]
    %v72 = vld [vmem:[%s0 + $0x1c8] sm:$0xff]
    %v73 = vld [vmem:[%s0 + $0x1d0] sm:$0xff]
    %v74 = vld [vmem:[%s0 + $0x1d8] sm:$0xff]
    %v75 = vld [vmem:[%s0 + $0x1e0] sm:$0xff]
    %v76 = vld [vmem:[%s0 + $0x1e8] sm:$0xff]
    %v77 = vld [vmem:[%s0 + $0x1f0] sm:$0xff]
    %v78 = vld [vmem:[%s0 + $0x1f8] sm:$0xff]
    %vm79 = vcmask 31744
    %v80 = vsel %vm79, %v15, 0.0
    %v81 = vsel %vm79, %v16, 0.0
    %v82 = vadd.f32 %v80, %v81
    %v83 = vsel %vm79, %v17, 0.0
    %v84 = vadd.f32 %v82, %v83
    %v85 = vsel %vm79, %v18, 0.0
    %v86 = vadd.f32 %v84, %v85
    %v87 = vsel %vm79, %v19, 0.0
    %v88 = vadd.f32 %v86, %v87
    %v89 = vsel %vm79, %v20, 0.0
    %v90 = vadd.f32 %v88, %v89
    %v91 = vsel %vm79, %v21, 0.0
    %v92 = vadd.f32 %v90, %v91
    %v93 = vsel %vm79, %v22, 0.0
    %v94 = vadd.f32 %v92, %v93
    %v95 = vsel %vm79, %v23, 0.0
    %v96 = vadd.f32 %v94, %v95
    %v97 = vsel %vm79, %v24, 0.0
    %v98 = vadd.f32 %v96, %v97
    %v99 = vsel %vm79, %v25, 0.0
    %v100 = vadd.f32 %v98, %v99
    %v101 = vsel %vm79, %v26, 0.0
    %v102 = vadd.f32 %v100, %v101
    %v103 = vsel %vm79, %v27, 0.0
    %v104 = vadd.f32 %v102, %v103
    %v105 = vsel %vm79, %v28, 0.0
    %v106 = vadd.f32 %v104, %v105
    %v107 = vsel %vm79, %v29, 0.0
    %v108 = vadd.f32 %v106, %v107
    %v109 = vsel %vm79, %v30, 0.0
    %v110 = vadd.f32 %v108, %v109
    %v111 = vsel %vm79, %v31, 0.0
    %v112 = vadd.f32 %v110, %v111
    %v113 = vsel %vm79, %v32, 0.0
    %v114 = vadd.f32 %v112, %v113
    %v115 = vsel %vm79, %v33, 0.0
    %v116 = vadd.f32 %v114, %v115
    %v117 = vsel %vm79, %v34, 0.0
    %v118 = vadd.f32 %v116, %v117
    %v119 = vsel %vm79, %v35, 0.0
    %v120 = vadd.f32 %v118, %v119
    %v121 = vsel %vm79, %v36, 0.0
    %v122 = vadd.f32 %v120, %v121
    %v123 = vsel %vm79, %v37, 0.0
    %v124 = vadd.f32 %v122, %v123
    %v125 = vsel %vm79, %v38, 0.0
    %v126 = vadd.f32 %v124, %v125
    %v127 = vsel %vm79, %v39, 0.0
    %v128 = vadd.f32 %v126, %v127
    %v129 = vsel %vm79, %v40, 0.0
    %v130 = vadd.f32 %v128, %v129
    %v131 = vsel %vm79, %v41, 0.0
    %v132 = vadd.f32 %v130, %v131
    %v133 = vsel %vm79, %v42, 0.0
    %v134 = vadd.f32 %v132, %v133
    %v135 = vsel %vm79, %v43, 0.0
    %v136 = vadd.f32 %v134, %v135
    %v137 = vsel %vm79, %v44, 0.0
    %v138 = vadd.f32 %v136, %v137
    %v139 = vsel %vm79, %v45, 0.0
    %v140 = vadd.f32 %v138, %v139
    %v141 = vsel %vm79, %v46, 0.0
    %v142 = vadd.f32 %v140, %v141
    %v143 = vrot.slane %v142, 4
    %v144 = vadd.f32 %v142, %v143
    %v145 = vrot.slane %v144, 2
    %v146 = vadd.f32 %v144, %v145
    %v147 = vrot.slane %v146, 1
    %v148 = vadd.f32 %v146, %v147
    %v149 = vsel %vm79, %v47, 0.0
    %v150 = vsel %vm79, %v48, 0.0
    %v151 = vadd.f32 %v149, %v150
    %v152 = vsel %vm79, %v49, 0.0
    %v153 = vadd.f32 %v151, %v152
    %v154 = vsel %vm79, %v50, 0.0
    %v155 = vadd.f32 %v153, %v154
    %v156 = vsel %vm79, %v51, 0.0
    %v157 = vadd.f32 %v155, %v156
    %v158 = vsel %vm79, %v52, 0.0
    %v159 = vadd.f32 %v157, %v158
    %v160 = vsel %vm79, %v53, 0.0
    %v161 = vadd.f32 %v159, %v160
    %v162 = vsel %vm79, %v54, 0.0
    %v163 = vadd.f32 %v161, %v162
    %v164 = vsel %vm79, %v55, 0.0
    %v165 = vadd.f32 %v163, %v164
    %v166 = vsel %vm79, %v56, 0.0
    %v167 = vadd.f32 %v165, %v166
    %v168 = vsel %vm79, %v57, 0.0
    %v169 = vadd.f32 %v167, %v168
    %v170 = vsel %vm79, %v58, 0.0
    %v171 = vadd.f32 %v169, %v170
    %v172 = vsel %vm79, %v59, 0.0
    %v173 = vadd.f32 %v171, %v172
    %v174 = vsel %vm79, %v60, 0.0
    %v175 = vadd.f32 %v173, %v174
    %v176 = vsel %vm79, %v61, 0.0
    %v177 = vadd.f32 %v175, %v176
    %v178 = vsel %vm79, %v62, 0.0
    %v179 = vadd.f32 %v177, %v178
    %v180 = vsel %vm79, %v63, 0.0
    %v181 = vadd.f32 %v179, %v180
    %v182 = vsel %vm79, %v64, 0.0
    %v183 = vadd.f32 %v181, %v182
    %v184 = vsel %vm79, %v65, 0.0
    %v185 = vadd.f32 %v183, %v184
    %v186 = vsel %vm79, %v66, 0.0
    %v187 = vadd.f32 %v185, %v186
    %v188 = vsel %vm79, %v67, 0.0
    %v189 = vadd.f32 %v187, %v188
    %v190 = vsel %vm79, %v68, 0.0
    %v191 = vadd.f32 %v189, %v190
    %v192 = vsel %vm79, %v69, 0.0
    %v193 = vadd.f32 %v191, %v192
    %v194 = vsel %vm79, %v70, 0.0
    %v195 = vadd.f32 %v193, %v194
    %v196 = vsel %vm79, %v71, 0.0
    %v197 = vadd.f32 %v195, %v196
    %v198 = vsel %vm79, %v72, 0.0
    %v199 = vadd.f32 %v197, %v198
    %v200 = vsel %vm79, %v73, 0.0
    %v201 = vadd.f32 %v199, %v200
    %v202 = vsel %vm79, %v74, 0.0
    %v203 = vadd.f32 %v201, %v202
    %v204 = vsel %vm79, %v75, 0.0
    %v205 = vadd.f32 %v203, %v204
    %v206 = vsel %vm79, %v76, 0.0
    %v207 = vadd.f32 %v205, %v206
    %v208 = vsel %vm79, %v77, 0.0
    %v209 = vadd.f32 %v207, %v208
    %v210 = vsel %vm79, %v78, 0.0
    %v211 = vadd.f32 %v209, %v210
    %v212 = vrot.slane %v211, 4
    %v213 = vadd.f32 %v211, %v212
    %v214 = vrot.slane %v213, 2
    %v215 = vadd.f32 %v213, %v214
    %v216 = vrot.slane %v215, 1
    %v217 = vadd.f32 %v215, %v216
    %v218 = vmul.f32 %v148, 0.00390625
    %v219 = vmul.f32 %v217, 0.00390625
    %v220 = vld [vmem:[%s1] sm:$0xff]
    %v221 = vld [vmem:[%s1 + $0x8] sm:$0xff]
    %v222 = vld [vmem:[%s1 + $0x10] sm:$0xff]
    %v223 = vld [vmem:[%s1 + $0x18] sm:$0xff]
    %v224 = vld [vmem:[%s1 + $0x20] sm:$0xff]
    %v225 = vld [vmem:[%s1 + $0x28] sm:$0xff]
    %v226 = vld [vmem:[%s1 + $0x30] sm:$0xff]
    %v227 = vld [vmem:[%s1 + $0x38] sm:$0xff]
    %v228 = vld [vmem:[%s1 + $0x40] sm:$0xff]
    %v229 = vld [vmem:[%s1 + $0x48] sm:$0xff]
    %v230 = vld [vmem:[%s1 + $0x50] sm:$0xff]
    %v231 = vld [vmem:[%s1 + $0x58] sm:$0xff]
    %v232 = vld [vmem:[%s1 + $0x60] sm:$0xff]
    %v233 = vld [vmem:[%s1 + $0x68] sm:$0xff]
    %v234 = vld [vmem:[%s1 + $0x70] sm:$0xff]
    %v235 = vld [vmem:[%s1 + $0x78] sm:$0xff]
    %v236 = vld [vmem:[%s2] sm:$0x1]
    %v238 = vlaneseq
    %v239 = vshrl.u32 %v238, 7
    %v240 = vsub.s32 0, %v239
    %v241 = vrot.slane %v236, %v240
    %vm245 = vcmask 1041409
    %v246 = vsel %vm245, %v219, %v218
    %v247 = vsel %vm79, %v246, 0
    %v250 = vsel %vm79, %v220, 0
    %v253 = vsel %vm79, %v221, 0
    %v256 = vsel %vm79, %v222, 0
    %v259 = vsel %vm79, %v223, 0
    %v262 = vsel %vm79, %v224, 0
    %v265 = vsel %vm79, %v225, 0
    %v268 = vsel %vm79, %v226, 0
    %v271 = vsel %vm79, %v227, 0
    %v274 = vsel %vm79, %v228, 0
    %v277 = vsel %vm79, %v229, 0
    %v280 = vsel %vm79, %v230, 0
    %v283 = vsel %vm79, %v231, 0
    %v286 = vsel %vm79, %v232, 0
    %v289 = vsel %vm79, %v233, 0
    %v292 = vsel %vm79, %v234, 0
    %v295 = vsel %vm79, %v235, 0
    %297 = vmatprep.subr.mxu0 0.0
    %298 = vmatpush1.xpose.msra.mxu0 %v295
    %299 = vmatprep.subr.mxu0 0.0
    %300 = vmatpush1.xpose.msra.mxu0 %v292
    %301 = vmatprep.subr.mxu0 0.0
    %302 = vmatpush1.xpose.msra.mxu0 %v289
    %303 = vmatprep.subr.mxu0 0.0
    %304 = vmatpush1.xpose.msra.mxu0 %v286
    %305 = vmatprep.subr.mxu0 0.0
    %306 = vmatpush1.xpose.msra.mxu0 %v283
    %307 = vmatprep.subr.mxu0 0.0
    %308 = vmatpush1.xpose.msra.mxu0 %v280
    %309 = vmatprep.subr.mxu0 0.0
    %310 = vmatpush1.xpose.msra.mxu0 %v277
    %311 = vmatprep.subr.mxu0 0.0
    %312 = vmatpush1.xpose.msra.mxu0 %v274
    %313 = vmatprep.subr.mxu0 0.0
    %314 = vmatpush1.xpose.msra.mxu0 %v271
    %315 = vmatprep.subr.mxu0 0.0
    %316 = vmatpush1.xpose.msra.mxu0 %v268
    %317 = vmatprep.subr.mxu0 0.0
    %318 = vmatpush1.xpose.msra.mxu0 %v265
    %319 = vmatprep.subr.mxu0 0.0
    %320 = vmatpush1.xpose.msra.mxu0 %v262
    %321 = vmatprep.subr.mxu0 0.0
    %322 = vmatpush1.xpose.msra.mxu0 %v259
    %323 = vmatprep.subr.mxu0 0.0
    %324 = vmatpush1.xpose.msra.mxu0 %v256
    %325 = vmatprep.subr.mxu0 0.0
    %326 = vmatpush1.xpose.msra.mxu0 %v253
    %327 = vmatprep.subr.mxu0 0.0
    %328 = vmatpush1.xpose.msra.mxu0 %v250
    %329 = vmatprep.subr.mxu0 0.0
    %330 = vmatpush2.xpose.msra.mxu0 0.0
    %331 = vmatprep.subr.mxu0 0.0
    %332 = vmatpush2.xpose.msra.mxu0 0.0
    %333 = vmatprep.subr.mxu0 0.0
    %334 = vmatpush2.xpose.msra.mxu0 0.0
    %335 = vmatprep.subr.mxu0 0.0
    %336 = vmatpush2.xpose.msra.mxu0 0.0
    %337 = vmatprep.subr.mxu0 0.0
    %338 = vmatpush2.xpose.msra.mxu0 0.0
    %339 = vmatprep.subr.mxu0 0.0
    %340 = vmatpush2.xpose.msra.mxu0 0.0
    %341 = vmatprep.subr.mxu0 0.0
    %342 = vmatpush2.xpose.msra.mxu0 0.0
    %343 = vmatprep.subr.mxu0 0.0
    %344 = vmatpush2.xpose.msra.mxu0 0.0
    %345 = vmatprep.subr.mxu0 0.0
    %346 = vmatpush2.xpose.msra.mxu0 0.0
    %347 = vmatprep.subr.mxu0 0.0
    %348 = vmatpush2.xpose.msra.mxu0 0.0
    %349 = vmatprep.subr.mxu0 0.0
    %350 = vmatpush2.xpose.msra.mxu0 0.0
    %351 = vmatprep.subr.mxu0 0.0
    %352 = vmatpush2.xpose.msra.mxu0 0.0
    %353 = vmatprep.subr.mxu0 0.0
    %354 = vmatpush2.xpose.msra.mxu0 0.0
    %355 = vmatprep.subr.mxu0 0.0
    %356 = vmatpush2.xpose.msra.mxu0 0.0
    %357 = vmatprep.subr.mxu0 0.0
    %358 = vmatpush2.xpose.msra.mxu0 0.0
    %359 = vmatprep.subr.mxu0 0.0
    %360 = vmatpush2.xpose.msra.mxu0 0.0
    %361 = vmatprep.mubr.f32.mxu0 0.0
    %362 = vmatmul.mubr.f32.gmra.mxu0 %v247
    %v363 = vpop.f32.mrf.mxu0
    %v364 = vadd.f32 %v241, %v363
    %v365 = vpop.f32.mrf.mxu0
    %366 = vdwg.mxu0
    %367 = vst [vmem:[#allocation2] sm:$0x3] %v364
    // Predicated region
    $region14: #{tpu_custom_call.1} parent=1 // pred_check
      _
    $region15: #{tpu_custom_call.1} parent=1 // pred_check_branch
      %369 = sbr.rel (0) target = $region17
    $region16: #{tpu_custom_call.1} parent=1 // pred_region
      %s371 = ssub.s32 32, 32
      %372 = vsyncadd [#allocation3], %s371
      %s374 = sshll.u32 [#allocation2], 4
      %s375 = int_to_ptr.vmem [resolvable:$true] %s374
      %377 = dma.vmem_to_hbm [thread:$0]  %s375, 32, %s3, [#allocation3]
    $region17: #{tpu_custom_call.1} parent=1 // pred_fallthru
      _
    // Predicated region
    $region18: #{tpu_custom_call.1} parent=1 // pred_check
      _
    $region19: #{tpu_custom_call.1} parent=1 // pred_check_branch
      %379 = sbr.rel (0) target = $region21
    $region20: #{tpu_custom_call.1} parent=1 // pred_region
      %380 = dma.done [#allocation3], 32
    $region21: #{tpu_custom_call.1} parent=1 // pred_fallthru
      _
    %381 = vsyncpa [#allocation3], 1

</llo_original>
